<compile_context>
chip_gen: v7x
topology: tpu7x:2x2x1
jax: 0.10.0
libtpu: 0.0.40
codegen_flags: <defaults>
</compile_context>

<pallas_src>
import jax
import jax.numpy as jnp
from jax import lax
from jax.experimental import pallas as pl
from jax.experimental.pallas import tpu as pltpu


def rnn_fused_kernel(ids_ref, emb_ref, w_ih_ref, w_hh_ref, b_ref,
                     w1_ref, b1_ref, w2_ref, b2_ref, w3_ref, b3_ref,
                     out_ref):
    SB = ids_ref.shape[0]            # S * B, time-major flat token ids
    V = emb_ref.shape[0]
    H = w_hh_ref.shape[0]
    B = out_ref.shape[0]
    S = SB // B

    # ---- fused embedding lookup: one-hot gather on the MXU -----------------
    ids = ids_ref[...]                                            # (SB, 1) int32
    vocab_iota = lax.broadcasted_iota(jnp.int32, (SB, V), 1)      # (SB, V)
    onehot = (vocab_iota == ids).astype(jnp.float32)              # (SB, V)
    x_all = jnp.dot(onehot, emb_ref[...],
                    preferred_element_type=jnp.float32)           # (SB, E)

    # ---- hoisted input projection: ONE matmul for all time steps -----------
    # xproj[t*B:(t+1)*B] == x_t @ W_ih + (b_ih + b_hh)
    xproj = jnp.dot(x_all, w_ih_ref[...],
                    preferred_element_type=jnp.float32) + b_ref[...]  # (SB, H)

    # ---- fully-unrolled tanh recurrence (PyTorch nn.RNN, tanh) --------------
    # h_t = tanh(x_t W_ih^T + b_ih + h_{t-1} W_hh^T + b_hh)
    w_hh = w_hh_ref[...]
    h = jnp.zeros((B, H), jnp.float32)
    acc = jnp.zeros((B, H), jnp.float32)
    for t in range(S):                       # S is static -> full unroll
        x_t = xproj[t * B:(t + 1) * B, :]    # static slice, (B, H)
        h = jnp.tanh(x_t + jnp.dot(h, w_hh, preferred_element_type=jnp.float32))
        acc = acc + h
    pooled = acc * (1.0 / S)                 # out.mean(dim=1)

    # ---- MLP head (Dropouts are identity at inference) + LogSoftmax ---------
    z1 = jnp.maximum(
        jnp.dot(pooled, w1_ref[...], preferred_element_type=jnp.float32) + b1_ref[...], 0.0)
    z2 = jnp.maximum(
        jnp.dot(z1, w2_ref[...], preferred_element_type=jnp.float32) + b2_ref[...], 0.0)
    logits = jnp.dot(z2, w3_ref[...], preferred_element_type=jnp.float32) + b3_ref[...]

    m = jnp.max(logits, axis=-1, keepdims=True)
    shifted = logits - m
    lse = jnp.log(jnp.sum(jnp.exp(shifted), axis=-1, keepdims=True))
    # TODO(synk): (B, 2) last-dim store is a masked vst; pad to a lane-dense slab if this
    # head ever gets fused into a larger pipeline / real batch sizes.
    out_ref[...] = shifted - lse


@jax.jit
def rnn_forward(x_ids, params):
    """x_ids: (B, S) int32 token ids -> (B, 2) log-probs. Single fused pallas_call."""
    B, S = x_ids.shape
    # Time-major flat ids (t*B + b) so the in-kernel recurrence slices contiguous rows.
    # (This is 64 bytes of int32 reshuffling; all float work happens inside the kernel.)
    ids_col = jnp.transpose(x_ids).reshape(S * B, 1).astype(jnp.int32)

    vmem = pl.BlockSpec(memory_space=pltpu.MemorySpace.VMEM)
    # TODO(synk): when batch becomes non-trivial, add grid=(B//TB,) with
    # dimension_semantics=("parallel",) so v7x's second TensorCore shares the batch.
    return pl.pallas_call(
        rnn_fused_kernel,
        out_shape=jax.ShapeDtypeStruct((B, 2), jnp.float32),
        in_specs=[vmem] * 11,
        out_specs=vmem,
    )(ids_col,
      params["emb_matrix"],
      params["w_ih"], params["w_hh"], params["b"],
      params["w1"], params["b1"],
      params["w2"], params["b2"],
      params["w3"], params["b3"])


def init_params(key, vocab_size, emb_dim, hidden_size):
    ks = jax.random.split(key, 10)
    scale = 0.1
    return {
        "emb_matrix": jax.random.normal(ks[0], (vocab_size, emb_dim), jnp.float32) * scale,
        # PyTorch nn.RNN: weight_ih_l0 (H, E), weight_hh_l0 (H, H); stored transposed here.
        "w_ih": jax.random.normal(ks[1], (emb_dim, hidden_size), jnp.float32) * scale,
        "w_hh": jax.random.normal(ks[2], (hidden_size, hidden_size), jnp.float32) * scale,
        # Combined bias: must be b_ih + b_hh when porting real PyTorch weights.
        "b": jax.random.normal(ks[3], (1, hidden_size), jnp.float32) * scale,
        # Head: Linear(H,32) -> ReLU -> Linear(32,16) -> ReLU -> Linear(16,2) -> LogSoftmax
        "w1": jax.random.normal(ks[4], (hidden_size, 32), jnp.float32) * scale,
        "b1": jax.random.normal(ks[5], (1, 32), jnp.float32) * scale,
        "w2": jax.random.normal(ks[6], (32, 16), jnp.float32) * scale,
        "b2": jax.random.normal(ks[7], (1, 16), jnp.float32) * scale,
        "w3": jax.random.normal(ks[8], (16, 2), jnp.float32) * scale,
        "b3": jax.random.normal(ks[9], (1, 2), jnp.float32) * scale,
    }


if __name__ == "__main__":
    # Small, module-consistent shapes: batch=2, seq=8, vocab=50, emb_dim=32, hidden=32.
    VOCAB, EMB, SEQ, HID, BATCH = 50, 32, 8, 32, 2

    key = jax.random.PRNGKey(0)
    k_par, k_ids = jax.random.split(key)
    params = init_params(k_par, VOCAB, EMB, HID)
    x_ids = jax.random.randint(k_ids, (BATCH, SEQ), 0, VOCAB, dtype=jnp.int32)

    log_probs = rnn_forward(x_ids, params)
    jax.block_until_ready(log_probs)

    assert log_probs.shape == (BATCH, 2)
    # log-softmax rows should sum to ~1 in prob space
    assert jnp.allclose(jnp.sum(jnp.exp(log_probs), axis=1), 1.0, atol=1e-4)

    # Cross-check the fused kernel against a pure-JAX reference of the same math.
    emb_ref = jnp.take(params["emb_matrix"], x_ids, axis=0)          # (B, S, E)
    h = jnp.zeros((BATCH, HID), jnp.float32)
    hs = []
    for t in range(SEQ):
        h = jnp.tanh(emb_ref[:, t, :] @ params["w_ih"] + h @ params["w_hh"] + params["b"])
        hs.append(h)
    pooled = jnp.mean(jnp.stack(hs, axis=1), axis=1)
    z1 = jnp.maximum(pooled @ params["w1"] + params["b1"], 0.0)
    z2 = jnp.maximum(z1 @ params["w2"] + params["b2"], 0.0)
    logits = z2 @ params["w3"] + params["b3"]
    ref = jax.nn.log_softmax(logits, axis=-1)
    assert jnp.allclose(log_probs, ref, atol=1e-5), "mismatch vs reference"

    print("KERNEL_OK")
</pallas_src>

<mosaic_0001>
module attributes {stable_mosaic.version = 11 : i64} {
  func.func @rnn_fused_kernel(%arg0: memref<16x1xi32, #tpu.memory_space<vmem>>, %arg1: memref<50x32xf32, #tpu.memory_space<vmem>>, %arg2: memref<32x32xf32, #tpu.memory_space<vmem>>, %arg3: memref<32x32xf32, #tpu.memory_space<vmem>>, %arg4: memref<1x32xf32, #tpu.memory_space<vmem>>, %arg5: memref<32x32xf32, #tpu.memory_space<vmem>>, %arg6: memref<1x32xf32, #tpu.memory_space<vmem>>, %arg7: memref<32x16xf32, #tpu.memory_space<vmem>>, %arg8: memref<1x16xf32, #tpu.memory_space<vmem>>, %arg9: memref<16x2xf32, #tpu.memory_space<vmem>>, %arg10: memref<1x2xf32, #tpu.memory_space<vmem>>, %arg11: memref<2x2xf32, #tpu.memory_space<vmem>>) attributes {dimension_semantics = [], scalar_prefetch = 0 : i64, scratch_operands = 0 : i64, tpu.core_type = #tpu.core_type<tc>} {
    %c0 = arith.constant 0 : index
    %c0_0 = arith.constant 0 : index
    %0 = vector.load %arg0[%c0, %c0_0] : memref<16x1xi32, #tpu.memory_space<vmem>>, vector<16x1xi32>
    %1 = tpu.iota {dimensions = array<i32: 1>} : vector<16x50xi32>
    %2 = vector.broadcast %0 : vector<16x1xi32> to vector<16x50xi32>
    %3 = arith.cmpi eq, %1, %2 : vector<16x50xi32>
    %4 = arith.extui %3 : vector<16x50xi1> to vector<16x50xi32>
    %5 = arith.sitofp %4 : vector<16x50xi32> to vector<16x50xf32>
    %c0_1 = arith.constant 0 : index
    %c0_2 = arith.constant 0 : index
    %6 = vector.load %arg1[%c0_1, %c0_2] : memref<50x32xf32, #tpu.memory_space<vmem>>, vector<50x32xf32>
    %cst = arith.constant dense<0.000000e+00> : vector<16x32xf32>
    %7 = tpu.matmul %5, %6, %cst {dimension_numbers = #tpu.dot_dimension_numbers<[1], [0], [0], [1], [0, 0, 1, 1], [], []>} : vector<16x50xf32>, vector<50x32xf32>, vector<16x32xf32> -> vector<16x32xf32>
    %c0_3 = arith.constant 0 : index
    %c0_4 = arith.constant 0 : index
    %8 = vector.load %arg2[%c0_3, %c0_4] : memref<32x32xf32, #tpu.memory_space<vmem>>, vector<32x32xf32>
    %cst_5 = arith.constant dense<0.000000e+00> : vector<16x32xf32>
    %9 = tpu.matmul %7, %8, %cst_5 {dimension_numbers = #tpu.dot_dimension_numbers<[1], [0], [0], [1], [0, 0, 1, 1], [], []>} : vector<16x32xf32>, vector<32x32xf32>, vector<16x32xf32> -> vector<16x32xf32>
    %c0_6 = arith.constant 0 : index
    %c0_7 = arith.constant 0 : index
    %10 = vector.load %arg4[%c0_6, %c0_7] : memref<1x32xf32, #tpu.memory_space<vmem>>, vector<1x32xf32>
    %11 = vector.broadcast %10 : vector<1x32xf32> to vector<16x32xf32>
    %12 = arith.addf %9, %11 : vector<16x32xf32>
    %c0_8 = arith.constant 0 : index
    %c0_9 = arith.constant 0 : index
    %13 = vector.load %arg3[%c0_8, %c0_9] : memref<32x32xf32, #tpu.memory_space<vmem>>, vector<32x32xf32>
    %cst_10 = arith.constant 0.000000e+00 : f32
    %14 = vector.broadcast %cst_10 : f32 to vector<2x32xf32>
    %cst_11 = arith.constant 0.000000e+00 : f32
    %15 = vector.broadcast %cst_11 : f32 to vector<2x32xf32>
    %16 = vector.extract_strided_slice %12 {offsets = [0, 0], sizes = [2, 32], strides = [1, 1]} : vector<16x32xf32> to vector<2x32xf32>
    %cst_12 = arith.constant dense<0.000000e+00> : vector<2x32xf32>
    %17 = tpu.matmul %14, %13, %cst_12 {dimension_numbers = #tpu.dot_dimension_numbers<[1], [0], [0], [1], [0, 0, 1, 1], [], []>} : vector<2x32xf32>, vector<32x32xf32>, vector<2x32xf32> -> vector<2x32xf32>
    %18 = arith.addf %16, %17 : vector<2x32xf32>
    %19 = math.tanh %18 : vector<2x32xf32>
    %20 = arith.addf %15, %19 : vector<2x32xf32>
    %21 = vector.extract_strided_slice %12 {offsets = [2, 0], sizes = [2, 32], strides = [1, 1]} : vector<16x32xf32> to vector<2x32xf32>
    %cst_13 = arith.constant dense<0.000000e+00> : vector<2x32xf32>
    %22 = tpu.matmul %19, %13, %cst_13 {dimension_numbers = #tpu.dot_dimension_numbers<[1], [0], [0], [1], [0, 0, 1, 1], [], []>} : vector<2x32xf32>, vector<32x32xf32>, vector<2x32xf32> -> vector<2x32xf32>
    %23 = arith.addf %21, %22 : vector<2x32xf32>
    %24 = math.tanh %23 : vector<2x32xf32>
    %25 = arith.addf %20, %24 : vector<2x32xf32>
    %26 = vector.extract_strided_slice %12 {offsets = [4, 0], sizes = [2, 32], strides = [1, 1]} : vector<16x32xf32> to vector<2x32xf32>
    %cst_14 = arith.constant dense<0.000000e+00> : vector<2x32xf32>
    %27 = tpu.matmul %24, %13, %cst_14 {dimension_numbers = #tpu.dot_dimension_numbers<[1], [0], [0], [1], [0, 0, 1, 1], [], []>} : vector<2x32xf32>, vector<32x32xf32>, vector<2x32xf32> -> vector<2x32xf32>
    %28 = arith.addf %26, %27 : vector<2x32xf32>
    %29 = math.tanh %28 : vector<2x32xf32>
    %30 = arith.addf %25, %29 : vector<2x32xf32>
    %31 = vector.extract_strided_slice %12 {offsets = [6, 0], sizes = [2, 32], strides = [1, 1]} : vector<16x32xf32> to vector<2x32xf32>
    %cst_15 = arith.constant dense<0.000000e+00> : vector<2x32xf32>
    %32 = tpu.matmul %29, %13, %cst_15 {dimension_numbers = #tpu.dot_dimension_numbers<[1], [0], [0], [1], [0, 0, 1, 1], [], []>} : vector<2x32xf32>, vector<32x32xf32>, vector<2x32xf32> -> vector<2x32xf32>
    %33 = arith.addf %31, %32 : vector<2x32xf32>
    %34 = math.tanh %33 : vector<2x32xf32>
    %35 = arith.addf %30, %34 : vector<2x32xf32>
    %36 = vector.extract_strided_slice %12 {offsets = [8, 0], sizes = [2, 32], strides = [1, 1]} : vector<16x32xf32> to vector<2x32xf32>
    %cst_16 = arith.constant dense<0.000000e+00> : vector<2x32xf32>
    %37 = tpu.matmul %34, %13, %cst_16 {dimension_numbers = #tpu.dot_dimension_numbers<[1], [0], [0], [1], [0, 0, 1, 1], [], []>} : vector<2x32xf32>, vector<32x32xf32>, vector<2x32xf32> -> vector<2x32xf32>
    %38 = arith.addf %36, %37 : vector<2x32xf32>
    %39 = math.tanh %38 : vector<2x32xf32>
    %40 = arith.addf %35, %39 : vector<2x32xf32>
    %41 = vector.extract_strided_slice %12 {offsets = [10, 0], sizes = [2, 32], strides = [1, 1]} : vector<16x32xf32> to vector<2x32xf32>
    %cst_17 = arith.constant dense<0.000000e+00> : vector<2x32xf32>
    %42 = tpu.matmul %39, %13, %cst_17 {dimension_numbers = #tpu.dot_dimension_numbers<[1], [0], [0], [1], [0, 0, 1, 1], [], []>} : vector<2x32xf32>, vector<32x32xf32>, vector<2x32xf32> -> vector<2x32xf32>
    %43 = arith.addf %41, %42 : vector<2x32xf32>
    %44 = math.tanh %43 : vector<2x32xf32>
    %45 = arith.addf %40, %44 : vector<2x32xf32>
    %46 = vector.extract_strided_slice %12 {offsets = [12, 0], sizes = [2, 32], strides = [1, 1]} : vector<16x32xf32> to vector<2x32xf32>
    %cst_18 = arith.constant dense<0.000000e+00> : vector<2x32xf32>
    %47 = tpu.matmul %44, %13, %cst_18 {dimension_numbers = #tpu.dot_dimension_numbers<[1], [0], [0], [1], [0, 0, 1, 1], [], []>} : vector<2x32xf32>, vector<32x32xf32>, vector<2x32xf32> -> vector<2x32xf32>
    %48 = arith.addf %46, %47 : vector<2x32xf32>
    %49 = math.tanh %48 : vector<2x32xf32>
    %50 = arith.addf %45, %49 : vector<2x32xf32>
    %51 = vector.extract_strided_slice %12 {offsets = [14, 0], sizes = [2, 32], strides = [1, 1]} : vector<16x32xf32> to vector<2x32xf32>
    %cst_19 = arith.constant dense<0.000000e+00> : vector<2x32xf32>
    %52 = tpu.matmul %49, %13, %cst_19 {dimension_numbers = #tpu.dot_dimension_numbers<[1], [0], [0], [1], [0, 0, 1, 1], [], []>} : vector<2x32xf32>, vector<32x32xf32>, vector<2x32xf32> -> vector<2x32xf32>
    %53 = arith.addf %51, %52 : vector<2x32xf32>
    %54 = math.tanh %53 : vector<2x32xf32>
    %55 = arith.addf %50, %54 : vector<2x32xf32>
    %cst_20 = arith.constant 1.250000e-01 : f32
    %56 = vector.broadcast %cst_20 : f32 to vector<2x32xf32>
    %57 = arith.mulf %55, %56 : vector<2x32xf32>
    %c0_21 = arith.constant 0 : index
    %c0_22 = arith.constant 0 : index
    %58 = vector.load %arg5[%c0_21, %c0_22] : memref<32x32xf32, #tpu.memory_space<vmem>>, vector<32x32xf32>
    %cst_23 = arith.constant dense<0.000000e+00> : vector<2x32xf32>
    %59 = tpu.matmul %57, %58, %cst_23 {dimension_numbers = #tpu.dot_dimension_numbers<[1], [0], [0], [1], [0, 0, 1, 1], [], []>} : vector<2x32xf32>, vector<32x32xf32>, vector<2x32xf32> -> vector<2x32xf32>
    %c0_24 = arith.constant 0 : index
    %c0_25 = arith.constant 0 : index
    %60 = vector.load %arg6[%c0_24, %c0_25] : memref<1x32xf32, #tpu.memory_space<vmem>>, vector<1x32xf32>
    %61 = vector.broadcast %60 : vector<1x32xf32> to vector<2x32xf32>
    %62 = arith.addf %59, %61 : vector<2x32xf32>
    %cst_26 = arith.constant 0.000000e+00 : f32
    %63 = vector.broadcast %cst_26 : f32 to vector<2x32xf32>
    %64 = arith.maximumf %62, %63 : vector<2x32xf32>
    %c0_27 = arith.constant 0 : index
    %c0_28 = arith.constant 0 : index
    %65 = vector.load %arg7[%c0_27, %c0_28] : memref<32x16xf32, #tpu.memory_space<vmem>>, vector<32x16xf32>
    %cst_29 = arith.constant dense<0.000000e+00> : vector<2x16xf32>
    %66 = tpu.matmul %64, %65, %cst_29 {dimension_numbers = #tpu.dot_dimension_numbers<[1], [0], [0], [1], [0, 0, 1, 1], [], []>} : vector<2x32xf32>, vector<32x16xf32>, vector<2x16xf32> -> vector<2x16xf32>
    %c0_30 = arith.constant 0 : index
    %c0_31 = arith.constant 0 : index
    %67 = vector.load %arg8[%c0_30, %c0_31] : memref<1x16xf32, #tpu.memory_space<vmem>>, vector<1x16xf32>
    %68 = vector.broadcast %67 : vector<1x16xf32> to vector<2x16xf32>
    %69 = arith.addf %66, %68 : vector<2x16xf32>
    %cst_32 = arith.constant 0.000000e+00 : f32
    %70 = vector.broadcast %cst_32 : f32 to vector<2x16xf32>
    %71 = arith.maximumf %69, %70 : vector<2x16xf32>
    %c0_33 = arith.constant 0 : index
    %c0_34 = arith.constant 0 : index
    %72 = vector.load %arg9[%c0_33, %c0_34] : memref<16x2xf32, #tpu.memory_space<vmem>>, vector<16x2xf32>
    %cst_35 = arith.constant dense<0.000000e+00> : vector<2x2xf32>
    %73 = tpu.matmul %71, %72, %cst_35 {dimension_numbers = #tpu.dot_dimension_numbers<[1], [0], [0], [1], [0, 0, 1, 1], [], []>} : vector<2x16xf32>, vector<16x2xf32>, vector<2x2xf32> -> vector<2x2xf32>
    %c0_36 = arith.constant 0 : index
    %c0_37 = arith.constant 0 : index
    %74 = vector.load %arg10[%c0_36, %c0_37] : memref<1x2xf32, #tpu.memory_space<vmem>>, vector<1x2xf32>
    %75 = vector.broadcast %74 : vector<1x2xf32> to vector<2x2xf32>
    %76 = arith.addf %73, %75 : vector<2x2xf32>
    %cst_38 = arith.constant dense<0xFF800000> : vector<2xf32>
    %77 = vector.multi_reduction <maximumf>, %76, %cst_38 [1] : vector<2x2xf32> to vector<2xf32>
    %78 = vector.shape_cast %77 : vector<2xf32> to vector<2x1xf32>
    %79 = vector.broadcast %78 : vector<2x1xf32> to vector<2x2xf32>
    %80 = arith.subf %76, %79 : vector<2x2xf32>
    %81 = math.exp %80 : vector<2x2xf32>
    %cst_39 = arith.constant dense<0.000000e+00> : vector<2xf32>
    %82 = vector.multi_reduction <add>, %81, %cst_39 [1] : vector<2x2xf32> to vector<2xf32>
    %83 = vector.shape_cast %82 : vector<2xf32> to vector<2x1xf32>
    %84 = math.log %83 : vector<2x1xf32>
    %85 = vector.broadcast %84 : vector<2x1xf32> to vector<2x2xf32>
    %86 = arith.subf %80, %85 : vector<2x2xf32>
    %c0_40 = arith.constant 0 : index
    %c0_41 = arith.constant 0 : index
    %87 = vector.load %arg11[%c0_40, %c0_41] : memref<2x2xf32, #tpu.memory_space<vmem>>, vector<2x2xf32>
    tpu.vector_store %arg11[%c0_40, %c0_41], %86 {strides = array<i32>} : memref<2x2xf32, #tpu.memory_space<vmem>>, vector<2x2xf32>,
    return
  }
}

</mosaic_0001>

<llo_original>
// kernel: rnn_forward.1
$region0: #{rnn_forward.1}
  #allocation0 [shape = 'u32[]', space=smem, size = 0x4, offset = 0x4, fixed_abs, tag = 'smem constant byte address 0x4 - core index']
  #allocation1 [shape = 'u32[144,128]{1,0:T(1,128)}', space=vmem, size = 0x12000, scoped, tag = 'internal scratch']
  %s0 = inlined_call_operand.vmem [shape: s32[16,1], index: 0, kind: input, shape index: {}]
  %s1 = inlined_call_operand.vmem [shape: f32[50,32], index: 1, kind: input, shape index: {}]
  %s2 = inlined_call_operand.vmem [shape: f32[32,32], index: 2, kind: input, shape index: {}]
  %s3 = inlined_call_operand.vmem [shape: f32[32,32], index: 3, kind: input, shape index: {}]
  %s4 = inlined_call_operand.vmem [shape: f32[1,32], index: 4, kind: input, shape index: {}]
  %s5 = inlined_call_operand.vmem [shape: f32[32,32], index: 5, kind: input, shape index: {}]
  %s6 = inlined_call_operand.vmem [shape: f32[1,32], index: 6, kind: input, shape index: {}]
  %s7 = inlined_call_operand.vmem [shape: f32[32,16], index: 7, kind: input, shape index: {}]
  %s8 = inlined_call_operand.vmem [shape: f32[1,16], index: 8, kind: input, shape index: {}]
  %s9 = inlined_call_operand.vmem [shape: f32[16,2], index: 9, kind: input, shape index: {}]
  %s10 = inlined_call_operand.vmem [shape: f32[1,2], index: 10, kind: input, shape index: {}]
  %s11 = inlined_call_operand.hbm [shape: f32[2,2], index: 11, kind: output, shape index: {}]
  %s12 = sld [smem:[#allocation0]]
  $region54: #{rnn_forward.1} parent=0
    _
  %s14 = ssub.s32 1, %s12
  %s15 = scalar_select 0, %s14, %s12
  $region1: #{rnn_forward.1} parent=0
    #allocation2 [shape = 'u8[1024]{0}', space=vmem, size = 0x400, scoped, tag = 'output window, operand 0, single buffered']
    #allocation3 [shape = 's32[1]{0}', space=sflag, size = 0x4, scoped, tag = 'scoped memory for rnn_forward.1']
    %16 = vsyncpa [#allocation3], 0
    // Predicated region
    $region2: #{rnn_forward.1} parent=1 // pred_check
      _
    $region3: #{rnn_forward.1} parent=1 // pred_check_branch
      %18 = sbr.rel (0) target = $region5
    $region4: #{rnn_forward.1} parent=1 // pred_region
      _
    $region5: #{rnn_forward.1} parent=1 // pred_fallthru
      _
    // Predicated region
    $region6: #{rnn_forward.1} parent=1 // pred_check
      _
    $region7: #{rnn_forward.1} parent=1 // pred_check_branch
      %20 = sbr.rel (0) target = $region9
    $region8: #{rnn_forward.1} parent=1 // pred_region
      _
    $region9: #{rnn_forward.1} parent=1 // pred_fallthru
      _
    // Predicated region
    $region10: #{rnn_forward.1} parent=1 // pred_check
      _
    $region11: #{rnn_forward.1} parent=1 // pred_check_branch
      %22 = sbr.rel (0) target = $region13
    $region12: #{rnn_forward.1} parent=1 // pred_region
      _
    $region13: #{rnn_forward.1} parent=1 // pred_fallthru
      _
    // Predicated region
    $region14: #{rnn_forward.1} parent=1 // pred_check
      _
    $region15: #{rnn_forward.1} parent=1 // pred_check_branch
      %24 = sbr.rel (0) target = $region17
    $region16: #{rnn_forward.1} parent=1 // pred_region
      _
    $region17: #{rnn_forward.1} parent=1 // pred_fallthru
      _
    // Predicated region
    $region18: #{rnn_forward.1} parent=1 // pred_check
      _
    $region19: #{rnn_forward.1} parent=1 // pred_check_branch
      %26 = sbr.rel (0) target = $region21
    $region20: #{rnn_forward.1} parent=1 // pred_region
      _
    $region21: #{rnn_forward.1} parent=1 // pred_fallthru
      _
    // Predicated region
    $region22: #{rnn_forward.1} parent=1 // pred_check
      _
    $region23: #{rnn_forward.1} parent=1 // pred_check_branch
      %28 = sbr.rel (0) target = $region25
    $region24: #{rnn_forward.1} parent=1 // pred_region
      _
    $region25: #{rnn_forward.1} parent=1 // pred_fallthru
      _
    // Predicated region
    $region26: #{rnn_forward.1} parent=1 // pred_check
      _
    $region27: #{rnn_forward.1} parent=1 // pred_check_branch
      %30 = sbr.rel (0) target = $region29
    $region28: #{rnn_forward.1} parent=1 // pred_region
      _
    $region29: #{rnn_forward.1} parent=1 // pred_fallthru
      _
    // Predicated region
    $region30: #{rnn_forward.1} parent=1 // pred_check
      _
    $region31: #{rnn_forward.1} parent=1 // pred_check_branch
      %32 = sbr.rel (0) target = $region33
    $region32: #{rnn_forward.1} parent=1 // pred_region
      _
    $region33: #{rnn_forward.1} parent=1 // pred_fallthru
      _
    // Predicated region
    $region34: #{rnn_forward.1} parent=1 // pred_check
      _
    $region35: #{rnn_forward.1} parent=1 // pred_check_branch
      %34 = sbr.rel (0) target = $region37
    $region36: #{rnn_forward.1} parent=1 // pred_region
      _
    $region37: #{rnn_forward.1} parent=1 // pred_fallthru
      _
    // Predicated region
    $region38: #{rnn_forward.1} parent=1 // pred_check
      _
    $region39: #{rnn_forward.1} parent=1 // pred_check_branch
      %36 = sbr.rel (0) target = $region41
    $region40: #{rnn_forward.1} parent=1 // pred_region
      _
    $region41: #{rnn_forward.1} parent=1 // pred_fallthru
      _
    // Predicated region
    $region42: #{rnn_forward.1} parent=1 // pred_check
      _
    $region43: #{rnn_forward.1} parent=1 // pred_check_branch
      %38 = sbr.rel (0) target = $region45
    $region44: #{rnn_forward.1} parent=1 // pred_region
      _
    $region45: #{rnn_forward.1} parent=1 // pred_fallthru
      _
    %v39 = vld [vmem:[%s0] sm:$0xff]
    %v40 = vld [vmem:[%s0 + $0x8] sm:$0xff]
    %v41 = vlaneseq
    %v42 = vand.u32 %v41, 127
    %43 = vset.pattern.permute.xlu0 0
    %44 = vperm.xlu0 %43, %v39
    %v45 = vpop.permute.xlu0 %44
    %46 = vset.pattern.permute.xlu0 0
    %47 = vperm.xlu0 %46, %v40
    %v48 = vpop.permute.xlu0 %47
    %vm49 = vcmp.eq.s32.totalorder %v42, %v45
    %vm50 = vcmp.eq.s32.totalorder %v42, %v48
    %v51 = vsel %vm49, 1, 0
    %v52 = vsel %vm50, 1, 0
    %v53 = vcvt.s32.f32 %v51
    %v54 = vcvt.s32.f32 %v52
    %v55 = vld [vmem:[%s1] sm:$0xff]
    %v56 = vld [vmem:[%s1 + $0x8] sm:$0xff]
    %v57 = vld [vmem:[%s1 + $0x10] sm:$0xff]
    %v58 = vld [vmem:[%s1 + $0x18] sm:$0xff]
    %v59 = vld [vmem:[%s1 + $0x20] sm:$0xff]
    %v60 = vld [vmem:[%s1 + $0x28] sm:$0xff]
    %v61 = vld [vmem:[%s1 + $0x30] sm:$0x3]
    %vm62 = vcmask 408576
    %v64 = vsel %vm62, %v53, 0
    %v67 = vsel %vm62, %v54, 0
    %vm69 = vcmask 1041408
    %v71 = vsel %vm69, %v61, 0
    %73 = vmatprep.subr.mxu0 0.0
    %74 = vmatpush1.msra.mxu0 %v55
    %75 = vmatprep.subr.mxu0 0.0
    %76 = vmatpush1.msra.mxu0 %v56
    %77 = vmatprep.subr.mxu0 0.0
    %78 = vmatpush1.msra.mxu0 %v57
    %79 = vmatprep.subr.mxu0 0.0
    %80 = vmatpush1.msra.mxu0 %v58
    %81 = vmatprep.subr.mxu0 0.0
    %82 = vmatpush1.msra.mxu0 %v59
    %83 = vmatprep.subr.mxu0 0.0
    %84 = vmatpush1.msra.mxu0 %v60
    %85 = vmatprep.subr.mxu0 0.0
    %86 = vmatpush1.msra.mxu0 %v71
    %87 = vmatprep.subr.mxu0 0.0
    %88 = vmatpush1.msra.mxu0 0.0
    %89 = vmatprep.subr.mxu0 0.0
    %90 = vmatpush1.msra.mxu0 0.0
    %91 = vmatprep.subr.mxu0 0.0
    %92 = vmatpush1.msra.mxu0 0.0
    %93 = vmatprep.subr.mxu0 0.0
    %94 = vmatpush1.msra.mxu0 0.0
    %95 = vmatprep.subr.mxu0 0.0
    %96 = vmatpush1.msra.mxu0 0.0
    %97 = vmatprep.subr.mxu0 0.0
    %98 = vmatpush1.msra.mxu0 0.0
    %99 = vmatprep.subr.mxu0 0.0
    %100 = vmatpush1.msra.mxu0 0.0
    %101 = vmatprep.subr.mxu0 0.0
    %102 = vmatpush1.msra.mxu0 0.0
    %103 = vmatprep.subr.mxu0 0.0
    %104 = vmatpush1.msra.mxu0 0.0
    %105 = vmatprep.subr.mxu0 0.0
    %106 = vmatpush1.msra.mxu0 0.0
    %107 = vmatprep.subr.mxu0 0.0
    %108 = vmatpush1.msra.mxu0 0.0
    %109 = vmatprep.subr.mxu0 0.0
    %110 = vmatpush1.msra.mxu0 0.0
    %111 = vmatprep.subr.mxu0 0.0
    %112 = vmatpush1.msra.mxu0 0.0
    %113 = vmatprep.subr.mxu0 0.0
    %114 = vmatpush1.msra.mxu0 0.0
    %115 = vmatprep.subr.mxu0 0.0
    %116 = vmatpush1.msra.mxu0 0.0
    %117 = vmatprep.subr.mxu0 0.0
    %118 = vmatpush1.msra.mxu0 0.0
    %119 = vmatprep.subr.mxu0 0.0
    %120 = vmatpush1.msra.mxu0 0.0
    %121 = vmatprep.subr.mxu0 0.0
    %122 = vmatpush1.msra.mxu0 0.0
    %123 = vmatprep.subr.mxu0 0.0
    %124 = vmatpush1.msra.mxu0 0.0
    %125 = vmatprep.subr.mxu0 0.0
    %126 = vmatpush1.msra.mxu0 0.0
    %127 = vmatprep.subr.mxu0 0.0
    %128 = vmatpush1.msra.mxu0 0.0
    %129 = vmatprep.subr.mxu0 0.0
    %130 = vmatpush1.msra.mxu0 0.0
    %131 = vmatprep.subr.mxu0 0.0
    %132 = vmatpush1.msra.mxu0 0.0
    %133 = vmatprep.subr.mxu0 0.0
    %134 = vmatpush1.msra.mxu0 0.0
    %135 = vmatprep.subr.mxu0 0.0
    %136 = vmatpush1.msra.mxu0 0.0
    %137 = vmatprep.mubr.f32.mxu0 0.0
    %138 = vmatmul.mubr.f32.gmra.mrb[0].mxu0 %v64
    %v139 = vpop.f32.mrb[0].mxu0
    %v140 = vadd.f32 0.0, %v139
    %v141 = vpop.f32.mrb[0].mxu0
    %142 = vmatprep.mubr.f32.mxu0 0.0
    %143 = vmatmul.mubr.f32.gmra.mrb[0].mxu0 %v67
    %v144 = vpop.f32.mrb[0].mxu0
    %v145 = vadd.f32 0.0, %v144
    %v146 = vpop.f32.mrb[0].mxu0
    %147 = vdwg.mxu0
    %v148 = vld [vmem:[%s2] sm:$0xff]
    %v149 = vld [vmem:[%s2 + $0x8] sm:$0xff]
    %v150 = vld [vmem:[%s2 + $0x10] sm:$0xff]
    %v151 = vld [vmem:[%s2 + $0x18] sm:$0xff]
    %v152 = vld [vmem:[%s4] sm:$0x1]
    %v154 = vlaneseq
    %v155 = vshrl.u32 %v154, 7
    %v156 = vsub.s32 0, %v155
    %v157 = vrot.slane %v152, %v156
    %vm159 = vcmask 261120
    %v161 = vsel %vm159, %v140, 0
    %v164 = vsel %vm159, %v145, 0
    %166 = vmatprep.subr.mxu0 0.0
    %167 = vmatpush1.msra.mxu0 %v148
    %168 = vmatprep.subr.mxu0 0.0
    %169 = vmatpush1.msra.mxu0 %v149
    %170 = vmatprep.subr.mxu0 0.0
    %171 = vmatpush1.msra.mxu0 %v150
    %172 = vmatprep.subr.mxu0 0.0
    %173 = vmatpush1.msra.mxu0 %v151
    %174 = vmatprep.subr.mxu0 0.0
    %175 = vmatpush1.msra.mxu0 0.0
    %176 = vmatprep.subr.mxu0 0.0
    %177 = vmatpush1.msra.mxu0 0.0
    %178 = vmatprep.subr.mxu0 0.0
    %179 = vmatpush1.msra.mxu0 0.0
    %180 = vmatprep.subr.mxu0 0.0
    %181 = vmatpush1.msra.mxu0 0.0
    %182 = vmatprep.subr.mxu0 0.0
    %183 = vmatpush1.msra.mxu0 0.0
    %184 = vmatprep.subr.mxu0 0.0
    %185 = vmatpush1.msra.mxu0 0.0
    %186 = vmatprep.subr.mxu0 0.0
    %187 = vmatpush1.msra.mxu0 0.0
    %188 = vmatprep.subr.mxu0 0.0
    %189 = vmatpush1.msra.mxu0 0.0
    %190 = vmatprep.subr.mxu0 0.0
    %191 = vmatpush1.msra.mxu0 0.0
    %192 = vmatprep.subr.mxu0 0.0
    %193 = vmatpush1.msra.mxu0 0.0
    %194 = vmatprep.subr.mxu0 0.0
    %195 = vmatpush1.msra.mxu0 0.0
    %196 = vmatprep.subr.mxu0 0.0
    %197 = vmatpush1.msra.mxu0 0.0
    %198 = vmatprep.subr.mxu0 0.0
    %199 = vmatpush1.msra.mxu0 0.0
    %200 = vmatprep.subr.mxu0 0.0
    %201 = vmatpush1.msra.mxu0 0.0
    %202 = vmatprep.subr.mxu0 0.0
    %203 = vmatpush1.msra.mxu0 0.0
    %204 = vmatprep.subr.mxu0 0.0
    %205 = vmatpush1.msra.mxu0 0.0
    %206 = vmatprep.subr.mxu0 0.0
    %207 = vmatpush1.msra.mxu0 0.0
    %208 = vmatprep.subr.mxu0 0.0
    %209 = vmatpush1.msra.mxu0 0.0
    %210 = vmatprep.subr.mxu0 0.0
    %211 = vmatpush1.msra.mxu0 0.0
    %212 = vmatprep.subr.mxu0 0.0
    %213 = vmatpush1.msra.mxu0 0.0
    %214 = vmatprep.subr.mxu0 0.0
    %215 = vmatpush1.msra.mxu0 0.0
    %216 = vmatprep.subr.mxu0 0.0
    %217 = vmatpush1.msra.mxu0 0.0
    %218 = vmatprep.subr.mxu0 0.0
    %219 = vmatpush1.msra.mxu0 0.0
    %220 = vmatprep.subr.mxu0 0.0
    %221 = vmatpush1.msra.mxu0 0.0
    %222 = vmatprep.subr.mxu0 0.0
    %223 = vmatpush1.msra.mxu0 0.0
    %224 = vmatprep.subr.mxu0 0.0
    %225 = vmatpush1.msra.mxu0 0.0
    %226 = vmatprep.subr.mxu0 0.0
    %227 = vmatpush1.msra.mxu0 0.0
    %228 = vmatprep.subr.mxu0 0.0
    %229 = vmatpush1.msra.mxu0 0.0
    %230 = vmatprep.mubr.f32.mxu0 0.0
    %231 = vmatmul.mubr.f32.gmra.mrb[0].mxu0 %v161
    %v232 = vpop.f32.mrb[0].mxu0
    %v233 = vadd.f32 %v157, %v232
    %v234 = vpop.f32.mrb[0].mxu0
    %235 = vmatprep.mubr.f32.mxu0 0.0
    %236 = vmatmul.mubr.f32.gmra.mrb[0].mxu0 %v164
    %v237 = vpop.f32.mrb[0].mxu0
    %v238 = vadd.f32 %v157, %v237
    %v239 = vpop.f32.mrb[0].mxu0
    %240 = vdwg.mxu0
    %v241 = vld [vmem:[%s3] sm:$0xff]
    %v242 = vld [vmem:[%s3 + $0x8] sm:$0xff]
    %v243 = vld [vmem:[%s3 + $0x10] sm:$0xff]
    %v244 = vld [vmem:[%s3 + $0x18] sm:$0xff]
    %v246 = vsel %vm159, 0.0, 0
    %248 = vmatprep.subr.mxu0 0.0
    %249 = vmatpush1.msra.mxu0 %v241
    %250 = vmatprep.subr.mxu0 0.0
    %251 = vmatpush1.msra.mxu0 %v242
    %252 = vmatprep.subr.mxu0 0.0
    %253 = vmatpush1.msra.mxu0 %v243
    %254 = vmatprep.subr.mxu0 0.0
    %255 = vmatpush1.msra.mxu0 %v244
    %256 = vmatprep.subr.mxu0 0.0
    %257 = vmatpush1.msra.mxu0 0.0
    %258 = vmatprep.subr.mxu0 0.0
    %259 = vmatpush1.msra.mxu0 0.0
    %260 = vmatprep.subr.mxu0 0.0
    %261 = vmatpush1.msra.mxu0 0.0
    %262 = vmatprep.subr.mxu0 0.0
    %263 = vmatpush1.msra.mxu0 0.0
    %264 = vmatprep.subr.mxu0 0.0
    %265 = vmatpush1.msra.mxu0 0.0
    %266 = vmatprep.subr.mxu0 0.0
    %267 = vmatpush1.msra.mxu0 0.0
    %268 = vmatprep.subr.mxu0 0.0
    %269 = vmatpush1.msra.mxu0 0.0
    %270 = vmatprep.subr.mxu0 0.0
    %271 = vmatpush1.msra.mxu0 0.0
    %272 = vmatprep.subr.mxu0 0.0
    %273 = vmatpush1.msra.mxu0 0.0
    %274 = vmatprep.subr.mxu0 0.0
    %275 = vmatpush1.msra.mxu0 0.0
    %276 = vmatprep.subr.mxu0 0.0
    %277 = vmatpush1.msra.mxu0 0.0
    %278 = vmatprep.subr.mxu0 0.0
    %279 = vmatpush1.msra.mxu0 0.0
    %280 = vmatprep.subr.mxu0 0.0
    %281 = vmatpush1.msra.mxu0 0.0
    %282 = vmatprep.subr.mxu0 0.0
    %283 = vmatpush1.msra.mxu0 0.0
    %284 = vmatprep.subr.mxu0 0.0
    %285 = vmatpush1.msra.mxu0 0.0
    %286 = vmatprep.subr.mxu0 0.0
    %287 = vmatpush1.msra.mxu0 0.0
    %288 = vmatprep.subr.mxu0 0.0
    %289 = vmatpush1.msra.mxu0 0.0
    %290 = vmatprep.subr.mxu0 0.0
    %291 = vmatpush1.msra.mxu0 0.0
    %292 = vmatprep.subr.mxu0 0.0
    %293 = vmatpush1.msra.mxu0 0.0
    %294 = vmatprep.subr.mxu0 0.0
    %295 = vmatpush1.msra.mxu0 0.0
    %296 = vmatprep.subr.mxu0 0.0
    %297 = vmatpush1.msra.mxu0 0.0
    %298 = vmatprep.subr.mxu0 0.0
    %299 = vmatpush1.msra.mxu0 0.0
    %300 = vmatprep.subr.mxu0 0.0
    %301 = vmatpush1.msra.mxu0 0.0
    %302 = vmatprep.subr.mxu0 0.0
    %303 = vmatpush1.msra.mxu0 0.0
    %304 = vmatprep.subr.mxu0 0.0
    %305 = vmatpush1.msra.mxu0 0.0
    %306 = vmatprep.subr.mxu0 0.0
    %307 = vmatpush1.msra.mxu0 0.0
    %308 = vmatprep.subr.mxu0 0.0
    %309 = vmatpush1.msra.mxu0 0.0
    %310 = vmatprep.subr.mxu0 0.0
    %311 = vmatpush1.msra.mxu0 0.0
    %312 = vmatprep.mubr.f32.mxu0 0.0
    %313 = vmatmul.mubr.f32.gmra.mrb[0].mxu0 %v246
    %v314 = vpop.f32.mrb[0].mxu0
    %v315 = vadd.f32 0.0, %v314
    %v316 = vpop.f32.mrb[0].mxu0
    %317 = vdwg.mxu0
    %v318 = vadd.f32 %v233, %v315
    %v319 = vtanh.pop %v318
    %v320 = vadd.f32 %v319, 0.0
    %v322 = vsel %vm159, %v319, 0
    %324 = vmatprep.subr.mxu0 0.0
    %325 = vmatpush1.msra.mxu0 %v241
    %326 = vmatprep.subr.mxu0 0.0
    %327 = vmatpush1.msra.mxu0 %v242
    %328 = vmatprep.subr.mxu0 0.0
    %329 = vmatpush1.msra.mxu0 %v243
    %330 = vmatprep.subr.mxu0 0.0
    %331 = vmatpush1.msra.mxu0 %v244
    %332 = vmatprep.subr.mxu0 0.0
    %333 = vmatpush1.msra.mxu0 0.0
    %334 = vmatprep.subr.mxu0 0.0
    %335 = vmatpush1.msra.mxu0 0.0
    %336 = vmatprep.subr.mxu0 0.0
    %337 = vmatpush1.msra.mxu0 0.0
    %338 = vmatprep.subr.mxu0 0.0
    %339 = vmatpush1.msra.mxu0 0.0
    %340 = vmatprep.subr.mxu0 0.0
    %341 = vmatpush1.msra.mxu0 0.0
    %342 = vmatprep.subr.mxu0 0.0
    %343 = vmatpush1.msra.mxu0 0.0
    %344 = vmatprep.subr.mxu0 0.0
    %345 = vmatpush1.msra.mxu0 0.0
    %346 = vmatprep.subr.mxu0 0.0
    %347 = vmatpush1.msra.mxu0 0.0
    %348 = vmatprep.subr.mxu0 0.0
    %349 = vmatpush1.msra.mxu0 0.0
    %350 = vmatprep.subr.mxu0 0.0
    %351 = vmatpush1.msra.mxu0 0.0
    %352 = vmatprep.subr.mxu0 0.0
    %353 = vmatpush1.msra.mxu0 0.0
    %354 = vmatprep.subr.mxu0 0.0
    %355 = vmatpush1.msra.mxu0 0.0
    %356 = vmatprep.subr.mxu0 0.0
    %357 = vmatpush1.msra.mxu0 0.0
    %358 = vmatprep.subr.mxu0 0.0
    %359 = vmatpush1.msra.mxu0 0.0
    %360 = vmatprep.subr.mxu0 0.0
    %361 = vmatpush1.msra.mxu0 0.0
    %362 = vmatprep.subr.mxu0 0.0
    %363 = vmatpush1.msra.mxu0 0.0
    %364 = vmatprep.subr.mxu0 0.0
    %365 = vmatpush1.msra.mxu0 0.0
    %366 = vmatprep.subr.mxu0 0.0
    %367 = vmatpush1.msra.mxu0 0.0
    %368 = vmatprep.subr.mxu0 0.0
    %369 = vmatpush1.msra.mxu0 0.0
    %370 = vmatprep.subr.mxu0 0.0
    %371 = vmatpush1.msra.mxu0 0.0
    %372 = vmatprep.subr.mxu0 0.0
    %373 = vmatpush1.msra.mxu0 0.0
    %374 = vmatprep.subr.mxu0 0.0
    %375 = vmatpush1.msra.mxu0 0.0
    %376 = vmatprep.subr.mxu0 0.0
    %377 = vmatpush1.msra.mxu0 0.0
    %378 = vmatprep.subr.mxu0 0.0
    %379 = vmatpush1.msra.mxu0 0.0
    %380 = vmatprep.subr.mxu0 0.0
    %381 = vmatpush1.msra.mxu0 0.0
    %382 = vmatprep.subr.mxu0 0.0
    %383 = vmatpush1.msra.mxu0 0.0
    %384 = vmatprep.subr.mxu0 0.0
    %385 = vmatpush1.msra.mxu0 0.0
    %386 = vmatprep.subr.mxu0 0.0
    %387 = vmatpush1.msra.mxu0 0.0
    %388 = vmatprep.mubr.f32.mxu0 0.0
    %389 = vmatmul.mubr.f32.gmra.mrb[0].mxu0 %v322
    %v390 = vpop.f32.mrb[0].mxu0
    %v391 = vadd.f32 0.0, %v390
    %v392 = vpop.f32.mrb[0].mxu0
    %393 = vdwg.mxu0
    %v395 = vrot.slane %v391, 6
    %v397 = vadd.f32 %v233, %v395
    %v398 = vtanh.pop %v397
    %v400 = vrot.slane %v398, 2
    %v402 = vadd.f32 %v320, %v400
    %v403 = vsel %vm159, %v400, 0
    %405 = vmatprep.subr.mxu0 0.0
    %406 = vmatpush1.msra.mxu0 %v241
    %407 = vmatprep.subr.mxu0 0.0
    %408 = vmatpush1.msra.mxu0 %v242
    %409 = vmatprep.subr.mxu0 0.0
    %410 = vmatpush1.msra.mxu0 %v243
    %411 = vmatprep.subr.mxu0 0.0
    %412 = vmatpush1.msra.mxu0 %v244
    %413 = vmatprep.subr.mxu0 0.0
    %414 = vmatpush1.msra.mxu0 0.0
    %415 = vmatprep.subr.mxu0 0.0
    %416 = vmatpush1.msra.mxu0 0.0
    %417 = vmatprep.subr.mxu0 0.0
    %418 = vmatpush1.msra.mxu0 0.0
    %419 = vmatprep.subr.mxu0 0.0
    %420 = vmatpush1.msra.mxu0 0.0
    %421 = vmatprep.subr.mxu0 0.0
    %422 = vmatpush1.msra.mxu0 0.0
    %423 = vmatprep.subr.mxu0 0.0
    %424 = vmatpush1.msra.mxu0 0.0
    %425 = vmatprep.subr.mxu0 0.0
    %426 = vmatpush1.msra.mxu0 0.0
    %427 = vmatprep.subr.mxu0 0.0
    %428 = vmatpush1.msra.mxu0 0.0
    %429 = vmatprep.subr.mxu0 0.0
    %430 = vmatpush1.msra.mxu0 0.0
    %431 = vmatprep.subr.mxu0 0.0
    %432 = vmatpush1.msra.mxu0 0.0
    %433 = vmatprep.subr.mxu0 0.0
    %434 = vmatpush1.msra.mxu0 0.0
    %435 = vmatprep.subr.mxu0 0.0
    %436 = vmatpush1.msra.mxu0 0.0
    %437 = vmatprep.subr.mxu0 0.0
    %438 = vmatpush1.msra.mxu0 0.0
    %439 = vmatprep.subr.mxu0 0.0
    %440 = vmatpush1.msra.mxu0 0.0
    %441 = vmatprep.subr.mxu0 0.0
    %442 = vmatpush1.msra.mxu0 0.0
    %443 = vmatprep.subr.mxu0 0.0
    %444 = vmatpush1.msra.mxu0 0.0
    %445 = vmatprep.subr.mxu0 0.0
    %446 = vmatpush1.msra.mxu0 0.0
    %447 = vmatprep.subr.mxu0 0.0
    %448 = vmatpush1.msra.mxu0 0.0
    %449 = vmatprep.subr.mxu0 0.0
    %450 = vmatpush1.msra.mxu0 0.0
    %451 = vmatprep.subr.mxu0 0.0
    %452 = vmatpush1.msra.mxu0 0.0
    %453 = vmatprep.subr.mxu0 0.0
    %454 = vmatpush1.msra.mxu0 0.0
    %455 = vmatprep.subr.mxu0 0.0
    %456 = vmatpush1.msra.mxu0 0.0
    %457 = vmatprep.subr.mxu0 0.0
    %458 = vmatpush1.msra.mxu0 0.0
    %459 = vmatprep.subr.mxu0 0.0
    %460 = vmatpush1.msra.mxu0 0.0
    %461 = vmatprep.subr.mxu0 0.0
    %462 = vmatpush1.msra.mxu0 0.0
    %463 = vmatprep.subr.mxu0 0.0
    %464 = vmatpush1.msra.mxu0 0.0
    %465 = vmatprep.subr.mxu0 0.0
    %466 = vmatpush1.msra.mxu0 0.0
    %467 = vmatprep.subr.mxu0 0.0
    %468 = vmatpush1.msra.mxu0 0.0
    %469 = vmatprep.mubr.f32.mxu0 0.0
    %470 = vmatmul.mubr.f32.gmra.mrb[0].mxu0 %v403
    %v471 = vpop.f32.mrb[0].mxu0
    %v472 = vadd.f32 0.0, %v471
    %v473 = vpop.f32.mrb[0].mxu0
    %474 = vdwg.mxu0
    %v476 = vrot.slane %v472, 4
    %v478 = vadd.f32 %v233, %v476
    %v479 = vtanh.pop %v478
    %v481 = vrot.slane %v479, 4
    %v483 = vadd.f32 %v402, %v481
    %v484 = vsel %vm159, %v481, 0
    %486 = vmatprep.subr.mxu0 0.0
    %487 = vmatpush1.msra.mxu0 %v241
    %488 = vmatprep.subr.mxu0 0.0
    %489 = vmatpush1.msra.mxu0 %v242
    %490 = vmatprep.subr.mxu0 0.0
    %491 = vmatpush1.msra.mxu0 %v243
    %492 = vmatprep.subr.mxu0 0.0
    %493 = vmatpush1.msra.mxu0 %v244
    %494 = vmatprep.subr.mxu0 0.0
    %495 = vmatpush1.msra.mxu0 0.0
    %496 = vmatprep.subr.mxu0 0.0
    %497 = vmatpush1.msra.mxu0 0.0
    %498 = vmatprep.subr.mxu0 0.0
    %499 = vmatpush1.msra.mxu0 0.0
    %500 = vmatprep.subr.mxu0 0.0
    %501 = vmatpush1.msra.mxu0 0.0
    %502 = vmatprep.subr.mxu0 0.0
    %503 = vmatpush1.msra.mxu0 0.0
    %504 = vmatprep.subr.mxu0 0.0
    %505 = vmatpush1.msra.mxu0 0.0
    %506 = vmatprep.subr.mxu0 0.0
    %507 = vmatpush1.msra.mxu0 0.0
    %508 = vmatprep.subr.mxu0 0.0
    %509 = vmatpush1.msra.mxu0 0.0
    %510 = vmatprep.subr.mxu0 0.0
    %511 = vmatpush1.msra.mxu0 0.0
    %512 = vmatprep.subr.mxu0 0.0
    %513 = vmatpush1.msra.mxu0 0.0
    %514 = vmatprep.subr.mxu0 0.0
    %515 = vmatpush1.msra.mxu0 0.0
    %516 = vmatprep.subr.mxu0 0.0
    %517 = vmatpush1.msra.mxu0 0.0
    %518 = vmatprep.subr.mxu0 0.0
    %519 = vmatpush1.msra.mxu0 0.0
    %520 = vmatprep.subr.mxu0 0.0
    %521 = vmatpush1.msra.mxu0 0.0
    %522 = vmatprep.subr.mxu0 0.0
    %523 = vmatpush1.msra.mxu0 0.0
    %524 = vmatprep.subr.mxu0 0.0
    %525 = vmatpush1.msra.mxu0 0.0
    %526 = vmatprep.subr.mxu0 0.0
    %527 = vmatpush1.msra.mxu0 0.0
    %528 = vmatprep.subr.mxu0 0.0
    %529 = vmatpush1.msra.mxu0 0.0
    %530 = vmatprep.subr.mxu0 0.0
    %531 = vmatpush1.msra.mxu0 0.0
    %532 = vmatprep.subr.mxu0 0.0
    %533 = vmatpush1.msra.mxu0 0.0
    %534 = vmatprep.subr.mxu0 0.0
    %535 = vmatpush1.msra.mxu0 0.0
    %536 = vmatprep.subr.mxu0 0.0
    %537 = vmatpush1.msra.mxu0 0.0
    %538 = vmatprep.subr.mxu0 0.0
    %539 = vmatpush1.msra.mxu0 0.0
    %540 = vmatprep.subr.mxu0 0.0
    %541 = vmatpush1.msra.mxu0 0.0
    %542 = vmatprep.subr.mxu0 0.0
    %543 = vmatpush1.msra.mxu0 0.0
    %544 = vmatprep.subr.mxu0 0.0
    %545 = vmatpush1.msra.mxu0 0.0
    %546 = vmatprep.subr.mxu0 0.0
    %547 = vmatpush1.msra.mxu0 0.0
    %548 = vmatprep.subr.mxu0 0.0
    %549 = vmatpush1.msra.mxu0 0.0
    %550 = vmatprep.mubr.f32.mxu0 0.0
    %551 = vmatmul.mubr.f32.gmra.mrb[0].mxu0 %v484
    %v552 = vpop.f32.mrb[0].mxu0
    %v553 = vadd.f32 0.0, %v552
    %v554 = vpop.f32.mrb[0].mxu0
    %555 = vdwg.mxu0
    %v557 = vrot.slane %v553, 2
    %v559 = vadd.f32 %v233, %v557
    %v560 = vtanh.pop %v559
    %v562 = vrot.slane %v560, 6
    %v564 = vadd.f32 %v483, %v562
    %v565 = vsel %vm159, %v562, 0
    %567 = vmatprep.subr.mxu0 0.0
    %568 = vmatpush1.msra.mxu0 %v241
    %569 = vmatprep.subr.mxu0 0.0
    %570 = vmatpush1.msra.mxu0 %v242
    %571 = vmatprep.subr.mxu0 0.0
    %572 = vmatpush1.msra.mxu0 %v243
    %573 = vmatprep.subr.mxu0 0.0
    %574 = vmatpush1.msra.mxu0 %v244
    %575 = vmatprep.subr.mxu0 0.0
    %576 = vmatpush1.msra.mxu0 0.0
    %577 = vmatprep.subr.mxu0 0.0
    %578 = vmatpush1.msra.mxu0 0.0
    %579 = vmatprep.subr.mxu0 0.0
    %580 = vmatpush1.msra.mxu0 0.0
    %581 = vmatprep.subr.mxu0 0.0
    %582 = vmatpush1.msra.mxu0 0.0
    %583 = vmatprep.subr.mxu0 0.0
    %584 = vmatpush1.msra.mxu0 0.0
    %585 = vmatprep.subr.mxu0 0.0
    %586 = vmatpush1.msra.mxu0 0.0
    %587 = vmatprep.subr.mxu0 0.0
    %588 = vmatpush1.msra.mxu0 0.0
    %589 = vmatprep.subr.mxu0 0.0
    %590 = vmatpush1.msra.mxu0 0.0
    %591 = vmatprep.subr.mxu0 0.0
    %592 = vmatpush1.msra.mxu0 0.0
    %593 = vmatprep.subr.mxu0 0.0
    %594 = vmatpush1.msra.mxu0 0.0
    %595 = vmatprep.subr.mxu0 0.0
    %596 = vmatpush1.msra.mxu0 0.0
    %597 = vmatprep.subr.mxu0 0.0
    %598 = vmatpush1.msra.mxu0 0.0
    %599 = vmatprep.subr.mxu0 0.0
    %600 = vmatpush1.msra.mxu0 0.0
    %601 = vmatprep.subr.mxu0 0.0
    %602 = vmatpush1.msra.mxu0 0.0
    %603 = vmatprep.subr.mxu0 0.0
    %604 = vmatpush1.msra.mxu0 0.0
    %605 = vmatprep.subr.mxu0 0.0
    %606 = vmatpush1.msra.mxu0 0.0
    %607 = vmatprep.subr.mxu0 0.0
    %608 = vmatpush1.msra.mxu0 0.0
    %609 = vmatprep.subr.mxu0 0.0
    %610 = vmatpush1.msra.mxu0 0.0
    %611 = vmatprep.subr.mxu0 0.0
    %612 = vmatpush1.msra.mxu0 0.0
    %613 = vmatprep.subr.mxu0 0.0
    %614 = vmatpush1.msra.mxu0 0.0
    %615 = vmatprep.subr.mxu0 0.0
    %616 = vmatpush1.msra.mxu0 0.0
    %617 = vmatprep.subr.mxu0 0.0
    %618 = vmatpush1.msra.mxu0 0.0
    %619 = vmatprep.subr.mxu0 0.0
    %620 = vmatpush1.msra.mxu0 0.0
    %621 = vmatprep.subr.mxu0 0.0
    %622 = vmatpush1.msra.mxu0 0.0
    %623 = vmatprep.subr.mxu0 0.0
    %624 = vmatpush1.msra.mxu0 0.0
    %625 = vmatprep.subr.mxu0 0.0
    %626 = vmatpush1.msra.mxu0 0.0
    %627 = vmatprep.subr.mxu0 0.0
    %628 = vmatpush1.msra.mxu0 0.0
    %629 = vmatprep.subr.mxu0 0.0
    %630 = vmatpush1.msra.mxu0 0.0
    %631 = vmatprep.mubr.f32.mxu0 0.0
    %632 = vmatmul.mubr.f32.gmra.mrb[0].mxu0 %v565
    %v633 = vpop.f32.mrb[0].mxu0
    %v634 = vadd.f32 0.0, %v633
    %v635 = vpop.f32.mrb[0].mxu0
    %636 = vdwg.mxu0
    %v637 = vadd.f32 %v238, %v634
    %v638 = vtanh.pop %v637
    %v639 = vadd.f32 %v564, %v638
    %v641 = vsel %vm159, %v638, 0
    %643 = vmatprep.subr.mxu0 0.0
    %644 = vmatpush1.msra.mxu0 %v241
    %645 = vmatprep.subr.mxu0 0.0
    %646 = vmatpush1.msra.mxu0 %v242
    %647 = vmatprep.subr.mxu0 0.0
    %648 = vmatpush1.msra.mxu0 %v243
    %649 = vmatprep.subr.mxu0 0.0
    %650 = vmatpush1.msra.mxu0 %v244
    %651 = vmatprep.subr.mxu0 0.0
    %652 = vmatpush1.msra.mxu0 0.0
    %653 = vmatprep.subr.mxu0 0.0
    %654 = vmatpush1.msra.mxu0 0.0
    %655 = vmatprep.subr.mxu0 0.0
    %656 = vmatpush1.msra.mxu0 0.0
    %657 = vmatprep.subr.mxu0 0.0
    %658 = vmatpush1.msra.mxu0 0.0
    %659 = vmatprep.subr.mxu0 0.0
    %660 = vmatpush1.msra.mxu0 0.0
    %661 = vmatprep.subr.mxu0 0.0
    %662 = vmatpush1.msra.mxu0 0.0
    %663 = vmatprep.subr.mxu0 0.0
    %664 = vmatpush1.msra.mxu0 0.0
    %665 = vmatprep.subr.mxu0 0.0
    %666 = vmatpush1.msra.mxu0 0.0
    %667 = vmatprep.subr.mxu0 0.0
    %668 = vmatpush1.msra.mxu0 0.0
    %669 = vmatprep.subr.mxu0 0.0
    %670 = vmatpush1.msra.mxu0 0.0
    %671 = vmatprep.subr.mxu0 0.0
    %672 = vmatpush1.msra.mxu0 0.0
    %673 = vmatprep.subr.mxu0 0.0
    %674 = vmatpush1.msra.mxu0 0.0
    %675 = vmatprep.subr.mxu0 0.0
    %676 = vmatpush1.msra.mxu0 0.0
    %677 = vmatprep.subr.mxu0 0.0
    %678 = vmatpush1.msra.mxu0 0.0
    %679 = vmatprep.subr.mxu0 0.0
    %680 = vmatpush1.msra.mxu0 0.0
    %681 = vmatprep.subr.mxu0 0.0
    %682 = vmatpush1.msra.mxu0 0.0
    %683 = vmatprep.subr.mxu0 0.0
    %684 = vmatpush1.msra.mxu0 0.0
    %685 = vmatprep.subr.mxu0 0.0
    %686 = vmatpush1.msra.mxu0 0.0
    %687 = vmatprep.subr.mxu0 0.0
    %688 = vmatpush1.msra.mxu0 0.0
    %689 = vmatprep.subr.mxu0 0.0
    %690 = vmatpush1.msra.mxu0 0.0
    %691 = vmatprep.subr.mxu0 0.0
    %692 = vmatpush1.msra.mxu0 0.0
    %693 = vmatprep.subr.mxu0 0.0
    %694 = vmatpush1.msra.mxu0 0.0
    %695 = vmatprep.subr.mxu0 0.0
    %696 = vmatpush1.msra.mxu0 0.0
    %697 = vmatprep.subr.mxu0 0.0
    %698 = vmatpush1.msra.mxu0 0.0
    %699 = vmatprep.subr.mxu0 0.0
    %700 = vmatpush1.msra.mxu0 0.0
    %701 = vmatprep.subr.mxu0 0.0
    %702 = vmatpush1.msra.mxu0 0.0
    %703 = vmatprep.subr.mxu0 0.0
    %704 = vmatpush1.msra.mxu0 0.0
    %705 = vmatprep.subr.mxu0 0.0
    %706 = vmatpush1.msra.mxu0 0.0
    %707 = vmatprep.mubr.f32.mxu0 0.0
    %708 = vmatmul.mubr.f32.gmra.mrb[0].mxu0 %v641
    %v709 = vpop.f32.mrb[0].mxu0
    %v710 = vadd.f32 0.0, %v709
    %v711 = vpop.f32.mrb[0].mxu0
    %712 = vdwg.mxu0
    %v714 = vrot.slane %v710, 6
    %v716 = vadd.f32 %v238, %v714
    %v717 = vtanh.pop %v716
    %v719 = vrot.slane %v717, 2
    %v721 = vadd.f32 %v639, %v719
    %v722 = vsel %vm159, %v719, 0
    %724 = vmatprep.subr.mxu0 0.0
    %725 = vmatpush1.msra.mxu0 %v241
    %726 = vmatprep.subr.mxu0 0.0
    %727 = vmatpush1.msra.mxu0 %v242
    %728 = vmatprep.subr.mxu0 0.0
    %729 = vmatpush1.msra.mxu0 %v243
    %730 = vmatprep.subr.mxu0 0.0
    %731 = vmatpush1.msra.mxu0 %v244
    %732 = vmatprep.subr.mxu0 0.0
    %733 = vmatpush1.msra.mxu0 0.0
    %734 = vmatprep.subr.mxu0 0.0
    %735 = vmatpush1.msra.mxu0 0.0
    %736 = vmatprep.subr.mxu0 0.0
    %737 = vmatpush1.msra.mxu0 0.0
    %738 = vmatprep.subr.mxu0 0.0
    %739 = vmatpush1.msra.mxu0 0.0
    %740 = vmatprep.subr.mxu0 0.0
    %741 = vmatpush1.msra.mxu0 0.0
    %742 = vmatprep.subr.mxu0 0.0
    %743 = vmatpush1.msra.mxu0 0.0
    %744 = vmatprep.subr.mxu0 0.0
    %745 = vmatpush1.msra.mxu0 0.0
    %746 = vmatprep.subr.mxu0 0.0
    %747 = vmatpush1.msra.mxu0 0.0
    %748 = vmatprep.subr.mxu0 0.0
    %749 = vmatpush1.msra.mxu0 0.0
    %750 = vmatprep.subr.mxu0 0.0
    %751 = vmatpush1.msra.mxu0 0.0
    %752 = vmatprep.subr.mxu0 0.0
    %753 = vmatpush1.msra.mxu0 0.0
    %754 = vmatprep.subr.mxu0 0.0
    %755 = vmatpush1.msra.mxu0 0.0
    %756 = vmatprep.subr.mxu0 0.0
    %757 = vmatpush1.msra.mxu0 0.0
    %758 = vmatprep.subr.mxu0 0.0
    %759 = vmatpush1.msra.mxu0 0.0
    %760 = vmatprep.subr.mxu0 0.0
    %761 = vmatpush1.msra.mxu0 0.0
    %762 = vmatprep.subr.mxu0 0.0
    %763 = vmatpush1.msra.mxu0 0.0
    %764 = vmatprep.subr.mxu0 0.0
    %765 = vmatpush1.msra.mxu0 0.0
    %766 = vmatprep.subr.mxu0 0.0
    %767 = vmatpush1.msra.mxu0 0.0
    %768 = vmatprep.subr.mxu0 0.0
    %769 = vmatpush1.msra.mxu0 0.0
    %770 = vmatprep.subr.mxu0 0.0
    %771 = vmatpush1.msra.mxu0 0.0
    %772 = vmatprep.subr.mxu0 0.0
    %773 = vmatpush1.msra.mxu0 0.0
    %774 = vmatprep.subr.mxu0 0.0
    %775 = vmatpush1.msra.mxu0 0.0
    %776 = vmatprep.subr.mxu0 0.0
    %777 = vmatpush1.msra.mxu0 0.0
    %778 = vmatprep.subr.mxu0 0.0
    %779 = vmatpush1.msra.mxu0 0.0
    %780 = vmatprep.subr.mxu0 0.0
    %781 = vmatpush1.msra.mxu0 0.0
    %782 = vmatprep.subr.mxu0 0.0
    %783 = vmatpush1.msra.mxu0 0.0
    %784 = vmatprep.subr.mxu0 0.0
    %785 = vmatpush1.msra.mxu0 0.0
    %786 = vmatprep.subr.mxu0 0.0
    %787 = vmatpush1.msra.mxu0 0.0
    %788 = vmatprep.mubr.f32.mxu0 0.0
    %789 = vmatmul.mubr.f32.gmra.mrb[0].mxu0 %v722
    %v790 = vpop.f32.mrb[0].mxu0
    %v791 = vadd.f32 0.0, %v790
    %v792 = vpop.f32.mrb[0].mxu0
    %793 = vdwg.mxu0
    %v795 = vrot.slane %v791, 4
    %v797 = vadd.f32 %v238, %v795
    %v798 = vtanh.pop %v797
    %v800 = vrot.slane %v798, 4
    %v802 = vadd.f32 %v721, %v800
    %v803 = vsel %vm159, %v800, 0
    %805 = vmatprep.subr.mxu0 0.0
    %806 = vmatpush1.msra.mxu0 %v241
    %807 = vmatprep.subr.mxu0 0.0
    %808 = vmatpush1.msra.mxu0 %v242
    %809 = vmatprep.subr.mxu0 0.0
    %810 = vmatpush1.msra.mxu0 %v243
    %811 = vmatprep.subr.mxu0 0.0
    %812 = vmatpush1.msra.mxu0 %v244
    %813 = vmatprep.subr.mxu0 0.0
    %814 = vmatpush1.msra.mxu0 0.0
    %815 = vmatprep.subr.mxu0 0.0
    %816 = vmatpush1.msra.mxu0 0.0
    %817 = vmatprep.subr.mxu0 0.0
    %818 = vmatpush1.msra.mxu0 0.0
    %819 = vmatprep.subr.mxu0 0.0
    %820 = vmatpush1.msra.mxu0 0.0
    %821 = vmatprep.subr.mxu0 0.0
    %822 = vmatpush1.msra.mxu0 0.0
    %823 = vmatprep.subr.mxu0 0.0
    %824 = vmatpush1.msra.mxu0 0.0
    %825 = vmatprep.subr.mxu0 0.0
    %826 = vmatpush1.msra.mxu0 0.0
    %827 = vmatprep.subr.mxu0 0.0
    %828 = vmatpush1.msra.mxu0 0.0
    %829 = vmatprep.subr.mxu0 0.0
    %830 = vmatpush1.msra.mxu0 0.0
    %831 = vmatprep.subr.mxu0 0.0
    %832 = vmatpush1.msra.mxu0 0.0
    %833 = vmatprep.subr.mxu0 0.0
    %834 = vmatpush1.msra.mxu0 0.0
    %835 = vmatprep.subr.mxu0 0.0
    %836 = vmatpush1.msra.mxu0 0.0
    %837 = vmatprep.subr.mxu0 0.0
    %838 = vmatpush1.msra.mxu0 0.0
    %839 = vmatprep.subr.mxu0 0.0
    %840 = vmatpush1.msra.mxu0 0.0
    %841 = vmatprep.subr.mxu0 0.0
    %842 = vmatpush1.msra.mxu0 0.0
    %843 = vmatprep.subr.mxu0 0.0
    %844 = vmatpush1.msra.mxu0 0.0
    %845 = vmatprep.subr.mxu0 0.0
    %846 = vmatpush1.msra.mxu0 0.0
    %847 = vmatprep.subr.mxu0 0.0
    %848 = vmatpush1.msra.mxu0 0.0
    %849 = vmatprep.subr.mxu0 0.0
    %850 = vmatpush1.msra.mxu0 0.0
    %851 = vmatprep.subr.mxu0 0.0
    %852 = vmatpush1.msra.mxu0 0.0
    %853 = vmatprep.subr.mxu0 0.0
    %854 = vmatpush1.msra.mxu0 0.0
    %855 = vmatprep.subr.mxu0 0.0
    %856 = vmatpush1.msra.mxu0 0.0
    %857 = vmatprep.subr.mxu0 0.0
    %858 = vmatpush1.msra.mxu0 0.0
    %859 = vmatprep.subr.mxu0 0.0
    %860 = vmatpush1.msra.mxu0 0.0
    %861 = vmatprep.subr.mxu0 0.0
    %862 = vmatpush1.msra.mxu0 0.0
    %863 = vmatprep.subr.mxu0 0.0
    %864 = vmatpush1.msra.mxu0 0.0
    %865 = vmatprep.subr.mxu0 0.0
    %866 = vmatpush1.msra.mxu0 0.0
    %867 = vmatprep.subr.mxu0 0.0
    %868 = vmatpush1.msra.mxu0 0.0
    %869 = vmatprep.mubr.f32.mxu0 0.0
    %870 = vmatmul.mubr.f32.gmra.mrb[0].mxu0 %v803
    %v871 = vpop.f32.mrb[0].mxu0
    %v872 = vadd.f32 0.0, %v871
    %v873 = vpop.f32.mrb[0].mxu0
    %874 = vdwg.mxu0
    %v876 = vrot.slane %v872, 2
    %v878 = vadd.f32 %v238, %v876
    %v879 = vtanh.pop %v878
    %v881 = vrot.slane %v879, 6
    %v883 = vadd.f32 %v802, %v881
    %v884 = vmul.f32 %v883, 0.125
    %v885 = vld [vmem:[%s5] sm:$0xff]
    %v886 = vld [vmem:[%s5 + $0x8] sm:$0xff]
    %v887 = vld [vmem:[%s5 + $0x10] sm:$0xff]
    %v888 = vld [vmem:[%s5 + $0x18] sm:$0xff]
    %v889 = vld [vmem:[%s6] sm:$0x1]
    %v891 = vlaneseq
    %v892 = vshrl.u32 %v891, 7
    %v893 = vsub.s32 0, %v892
    %v894 = vrot.slane %v889, %v893
    %v897 = vsel %vm159, %v884, 0
    %899 = vmatprep.subr.mxu0 0.0
    %900 = vmatpush1.msra.mxu0 %v885
    %901 = vmatprep.subr.mxu0 0.0
    %902 = vmatpush1.msra.mxu0 %v886
    %903 = vmatprep.subr.mxu0 0.0
    %904 = vmatpush1.msra.mxu0 %v887
    %905 = vmatprep.subr.mxu0 0.0
    %906 = vmatpush1.msra.mxu0 %v888
    %907 = vmatprep.subr.mxu0 0.0
    %908 = vmatpush1.msra.mxu0 0.0
    %909 = vmatprep.subr.mxu0 0.0
    %910 = vmatpush1.msra.mxu0 0.0
    %911 = vmatprep.subr.mxu0 0.0
    %912 = vmatpush1.msra.mxu0 0.0
    %913 = vmatprep.subr.mxu0 0.0
    %914 = vmatpush1.msra.mxu0 0.0
    %915 = vmatprep.subr.mxu0 0.0
    %916 = vmatpush1.msra.mxu0 0.0
    %917 = vmatprep.subr.mxu0 0.0
    %918 = vmatpush1.msra.mxu0 0.0
    %919 = vmatprep.subr.mxu0 0.0
    %920 = vmatpush1.msra.mxu0 0.0
    %921 = vmatprep.subr.mxu0 0.0
    %922 = vmatpush1.msra.mxu0 0.0
    %923 = vmatprep.subr.mxu0 0.0
    %924 = vmatpush1.msra.mxu0 0.0
    %925 = vmatprep.subr.mxu0 0.0
    %926 = vmatpush1.msra.mxu0 0.0
    %927 = vmatprep.subr.mxu0 0.0
    %928 = vmatpush1.msra.mxu0 0.0
    %929 = vmatprep.subr.mxu0 0.0
    %930 = vmatpush1.msra.mxu0 0.0
    %931 = vmatprep.subr.mxu0 0.0
    %932 = vmatpush1.msra.mxu0 0.0
    %933 = vmatprep.subr.mxu0 0.0
    %934 = vmatpush1.msra.mxu0 0.0
    %935 = vmatprep.subr.mxu0 0.0
    %936 = vmatpush1.msra.mxu0 0.0
    %937 = vmatprep.subr.mxu0 0.0
    %938 = vmatpush1.msra.mxu0 0.0
    %939 = vmatprep.subr.mxu0 0.0
    %940 = vmatpush1.msra.mxu0 0.0
    %941 = vmatprep.subr.mxu0 0.0
    %942 = vmatpush1.msra.mxu0 0.0
    %943 = vmatprep.subr.mxu0 0.0
    %944 = vmatpush1.msra.mxu0 0.0
    %945 = vmatprep.subr.mxu0 0.0
    %946 = vmatpush1.msra.mxu0 0.0
    %947 = vmatprep.subr.mxu0 0.0
    %948 = vmatpush1.msra.mxu0 0.0
    %949 = vmatprep.subr.mxu0 0.0
    %950 = vmatpush1.msra.mxu0 0.0
    %951 = vmatprep.subr.mxu0 0.0
    %952 = vmatpush1.msra.mxu0 0.0
    %953 = vmatprep.subr.mxu0 0.0
    %954 = vmatpush1.msra.mxu0 0.0
    %955 = vmatprep.subr.mxu0 0.0
    %956 = vmatpush1.msra.mxu0 0.0
    %957 = vmatprep.subr.mxu0 0.0
    %958 = vmatpush1.msra.mxu0 0.0
    %959 = vmatprep.subr.mxu0 0.0
    %960 = vmatpush1.msra.mxu0 0.0
    %961 = vmatprep.subr.mxu0 0.0
    %962 = vmatpush1.msra.mxu0 0.0
    %963 = vmatprep.mubr.f32.mxu0 0.0
    %964 = vmatmul.mubr.f32.gmra.mrb[0].mxu0 %v897
    %v965 = vpop.f32.mrb[0].mxu0
    %v966 = vadd.f32 %v894, %v965
    %v967 = vpop.f32.mrb[0].mxu0
    %968 = vdwg.mxu0
    %v969 = vmax.f32 %v966, 0.0
    %v970 = vld [vmem:[%s7] sm:$0xff]
    %v971 = vld [vmem:[%s7 + $0x8] sm:$0xff]
    %v972 = vld [vmem:[%s7 + $0x10] sm:$0xff]
    %v973 = vld [vmem:[%s7 + $0x18] sm:$0xff]
    %v974 = vld [vmem:[%s8] sm:$0x1]
    %v976 = vlaneseq
    %v977 = vshrl.u32 %v976, 7
    %v978 = vsub.s32 0, %v977
    %v979 = vrot.slane %v974, %v978
    %v982 = vsel %vm159, %v969, 0
    %984 = vmatprep.subr.mxu0 0.0
    %985 = vmatpush1.msra.mxu0 %v970
    %986 = vmatprep.subr.mxu0 0.0
    %987 = vmatpush1.msra.mxu0 %v971
    %988 = vmatprep.subr.mxu0 0.0
    %989 = vmatpush1.msra.mxu0 %v972
    %990 = vmatprep.subr.mxu0 0.0
    %991 = vmatpush1.msra.mxu0 %v973
    %992 = vmatprep.subr.mxu0 0.0
    %993 = vmatpush1.msra.mxu0 0.0
    %994 = vmatprep.subr.mxu0 0.0
    %995 = vmatpush1.msra.mxu0 0.0
    %996 = vmatprep.subr.mxu0 0.0
    %997 = vmatpush1.msra.mxu0 0.0
    %998 = vmatprep.subr.mxu0 0.0
    %999 = vmatpush1.msra.mxu0 0.0
    %1000 = vmatprep.subr.mxu0 0.0
    %1001 = vmatpush1.msra.mxu0 0.0
    %1002 = vmatprep.subr.mxu0 0.0
    %1003 = vmatpush1.msra.mxu0 0.0
    %1004 = vmatprep.subr.mxu0 0.0
    %1005 = vmatpush1.msra.mxu0 0.0
    %1006 = vmatprep.subr.mxu0 0.0
    %1007 = vmatpush1.msra.mxu0 0.0
    %1008 = vmatprep.subr.mxu0 0.0
    %1009 = vmatpush1.msra.mxu0 0.0
    %1010 = vmatprep.subr.mxu0 0.0
    %1011 = vmatpush1.msra.mxu0 0.0
    %1012 = vmatprep.subr.mxu0 0.0
    %1013 = vmatpush1.msra.mxu0 0.0
    %1014 = vmatprep.subr.mxu0 0.0
    %1015 = vmatpush1.msra.mxu0 0.0
    %1016 = vmatprep.subr.mxu0 0.0
    %1017 = vmatpush1.msra.mxu0 0.0
    %1018 = vmatprep.subr.mxu0 0.0
    %1019 = vmatpush1.msra.mxu0 0.0
    %1020 = vmatprep.subr.mxu0 0.0
    %1021 = vmatpush1.msra.mxu0 0.0
    %1022 = vmatprep.subr.mxu0 0.0
    %1023 = vmatpush1.msra.mxu0 0.0
    %1024 = vmatprep.subr.mxu0 0.0
    %1025 = vmatpush1.msra.mxu0 0.0
    %1026 = vmatprep.subr.mxu0 0.0
    %1027 = vmatpush1.msra.mxu0 0.0
    %1028 = vmatprep.subr.mxu0 0.0
    %1029 = vmatpush1.msra.mxu0 0.0
    %1030 = vmatprep.subr.mxu0 0.0
    %1031 = vmatpush1.msra.mxu0 0.0
    %1032 = vmatprep.subr.mxu0 0.0
    %1033 = vmatpush1.msra.mxu0 0.0
    %1034 = vmatprep.subr.mxu0 0.0
    %1035 = vmatpush1.msra.mxu0 0.0
    %1036 = vmatprep.subr.mxu0 0.0
    %1037 = vmatpush1.msra.mxu0 0.0
    %1038 = vmatprep.subr.mxu0 0.0
    %1039 = vmatpush1.msra.mxu0 0.0
    %1040 = vmatprep.subr.mxu0 0.0
    %1041 = vmatpush1.msra.mxu0 0.0
    %1042 = vmatprep.subr.mxu0 0.0
    %1043 = vmatpush1.msra.mxu0 0.0
    %1044 = vmatprep.subr.mxu0 0.0
    %1045 = vmatpush1.msra.mxu0 0.0
    %1046 = vmatprep.subr.mxu0 0.0
    %1047 = vmatpush1.msra.mxu0 0.0
    %1048 = vmatprep.mubr.f32.mxu0 0.0
    %1049 = vmatmul.mubr.f32.gmra.mrb[0].mxu0 %v982
    %v1050 = vpop.f32.mrb[0].mxu0
    %v1051 = vadd.f32 %v979, %v1050
    %v1052 = vpop.f32.mrb[0].mxu0
    %1053 = vdwg.mxu0
    %v1054 = vmax.f32 %v1051, 0.0
    %v1055 = vld [vmem:[%s9] sm:$0xff]
    %v1056 = vld [vmem:[%s9 + $0x8] sm:$0xff]
    %v1057 = vld [vmem:[%s10] sm:$0x1]
    %v1059 = vlaneseq
    %v1060 = vshrl.u32 %v1059, 7
    %v1061 = vsub.s32 0, %v1060
    %v1062 = vrot.slane %v1057, %v1061
    %vm1064 = vcmask 130048
    %v1066 = vsel %vm1064, %v1054, 0
    %1068 = vmatprep.subr.mxu0 0.0
    %1069 = vmatpush1.msra.mxu0 %v1055
    %1070 = vmatprep.subr.mxu0 0.0
    %1071 = vmatpush1.msra.mxu0 %v1056
    %1072 = vmatprep.subr.mxu0 0.0
    %1073 = vmatpush1.msra.mxu0 0.0
    %1074 = vmatprep.subr.mxu0 0.0
    %1075 = vmatpush1.msra.mxu0 0.0
    %1076 = vmatprep.subr.mxu0 0.0
    %1077 = vmatpush1.msra.mxu0 0.0
    %1078 = vmatprep.subr.mxu0 0.0
    %1079 = vmatpush1.msra.mxu0 0.0
    %1080 = vmatprep.subr.mxu0 0.0
    %1081 = vmatpush1.msra.mxu0 0.0
    %1082 = vmatprep.subr.mxu0 0.0
    %1083 = vmatpush1.msra.mxu0 0.0
    %1084 = vmatprep.subr.mxu0 0.0
    %1085 = vmatpush1.msra.mxu0 0.0
    %1086 = vmatprep.subr.mxu0 0.0
    %1087 = vmatpush1.msra.mxu0 0.0
    %1088 = vmatprep.subr.mxu0 0.0
    %1089 = vmatpush1.msra.mxu0 0.0
    %1090 = vmatprep.subr.mxu0 0.0
    %1091 = vmatpush1.msra.mxu0 0.0
    %1092 = vmatprep.subr.mxu0 0.0
    %1093 = vmatpush1.msra.mxu0 0.0
    %1094 = vmatprep.subr.mxu0 0.0
    %1095 = vmatpush1.msra.mxu0 0.0
    %1096 = vmatprep.subr.mxu0 0.0
    %1097 = vmatpush1.msra.mxu0 0.0
    %1098 = vmatprep.subr.mxu0 0.0
    %1099 = vmatpush1.msra.mxu0 0.0
    %1100 = vmatprep.subr.mxu0 0.0
    %1101 = vmatpush1.msra.mxu0 0.0
    %1102 = vmatprep.subr.mxu0 0.0
    %1103 = vmatpush1.msra.mxu0 0.0
    %1104 = vmatprep.subr.mxu0 0.0
    %1105 = vmatpush1.msra.mxu0 0.0
    %1106 = vmatprep.subr.mxu0 0.0
    %1107 = vmatpush1.msra.mxu0 0.0
    %1108 = vmatprep.subr.mxu0 0.0
    %1109 = vmatpush1.msra.mxu0 0.0
    %1110 = vmatprep.subr.mxu0 0.0
    %1111 = vmatpush1.msra.mxu0 0.0
    %1112 = vmatprep.subr.mxu0 0.0
    %1113 = vmatpush1.msra.mxu0 0.0
    %1114 = vmatprep.subr.mxu0 0.0
    %1115 = vmatpush1.msra.mxu0 0.0
    %1116 = vmatprep.subr.mxu0 0.0
    %1117 = vmatpush1.msra.mxu0 0.0
    %1118 = vmatprep.subr.mxu0 0.0
    %1119 = vmatpush1.msra.mxu0 0.0
    %1120 = vmatprep.subr.mxu0 0.0
    %1121 = vmatpush1.msra.mxu0 0.0
    %1122 = vmatprep.subr.mxu0 0.0
    %1123 = vmatpush1.msra.mxu0 0.0
    %1124 = vmatprep.subr.mxu0 0.0
    %1125 = vmatpush1.msra.mxu0 0.0
    %1126 = vmatprep.subr.mxu0 0.0
    %1127 = vmatpush1.msra.mxu0 0.0
    %1128 = vmatprep.subr.mxu0 0.0
    %1129 = vmatpush1.msra.mxu0 0.0
    %1130 = vmatprep.subr.mxu0 0.0
    %1131 = vmatpush1.msra.mxu0 0.0
    %1132 = vmatprep.mubr.f32.mxu0 0.0
    %1133 = vmatmul.mubr.f32.gmra.mrb[0].mxu0 %v1066
    %v1134 = vpop.f32.mrb[0].mxu0
    %v1135 = vadd.f32 %v1062, %v1134
    %v1136 = vpop.f32.mrb[0].mxu0
    %1137 = vdwg.mxu0
    %vm1138 = vcmask 9216
    %v1139 = vsel %vm1138, %v1135, -inf
    %1140 = vmax.xlane.f32.xlu0 %v1139
    %v1141 = vpop.xlane.xlu0 %1140
    %v1142 = vsub.f32 %v1135, %v1141
    %v1143 = vmul.f32 %v1142, 1.442695
    %v1144 = vpow.pop %v1143
    %v1145 = vsel %vm1138, %v1144, 0.0
    %1146 = vadd.xlane.f32.xlu0 %v1145
    %v1147 = vpop.xlane.xlu0 %1146
    %v1148 = vlog2.pop %v1147
    %v1149 = vmul.f32 %v1148, 0.6931472
    %v1150 = vsub.f32 %v1142, %v1149
    %1151 = vst.msk [vmem:[#allocation2] sm:$0x3] %vm1138, %v1150
    // Predicated region
    $region46: #{rnn_forward.1} parent=1 // pred_check
      _
    $region47: #{rnn_forward.1} parent=1 // pred_check_branch
      %1153 = sbr.rel (0) target = $region49
    $region48: #{rnn_forward.1} parent=1 // pred_region
      %s1155 = ssub.s32 32, 32
      %1156 = vsyncadd [#allocation3], %s1155
      %s1158 = sshll.u32 [#allocation2], 4
      %s1159 = int_to_ptr.vmem [resolvable:$true] %s1158
      %1161 = dma.vmem_to_hbm [thread:$0]  %s1159, 32, %s11, [#allocation3]
    $region49: #{rnn_forward.1} parent=1 // pred_fallthru
      _
    // Predicated region
    $region50: #{rnn_forward.1} parent=1 // pred_check
      _
    $region51: #{rnn_forward.1} parent=1 // pred_check_branch
      %1163 = sbr.rel (0) target = $region53
    $region52: #{rnn_forward.1} parent=1 // pred_region
      %1164 = dma.done [#allocation3], 32
    $region53: #{rnn_forward.1} parent=1 // pred_fallthru
      _
    %1165 = vsyncpa [#allocation3], 1

</llo_original>
